<compile_context>
chip_gen: v5e
topology: v5e:2x2
jax: 0.10.0
libtpu: 0.0.40
codegen_flags: <defaults>
</compile_context>

<pallas_src>
import functools

import jax
import jax.numpy as jnp
from jax.experimental import pallas as pl
from jax.experimental.pallas import tpu as pltpu

_BN_EPS = 1e-5


@functools.lru_cache(maxsize=None)
def _chip_config():
    """Per-generation tuning knobs derived from the attached device kind."""
    try:
        kind = jax.devices()[0].device_kind.lower()
    except Exception:  # no device attached / non-TPU backend
        kind = ""
    if "v7" in kind:   # 2 TensorCores per chip, 64 MiB VMEM per TC, bf16 MXU
        return {"n_tc": 2, "vmem_limit": 44 * 2**20, "mm_dtype": jnp.bfloat16}
    if "v6" in kind:   # single TC, 128 MiB VMEM, native bf16 MXU
        return {"n_tc": 1, "vmem_limit": 64 * 2**20, "mm_dtype": jnp.bfloat16}
    if "v5" in kind or "v4" in kind:
        return {"n_tc": 1, "vmem_limit": 64 * 2**20, "mm_dtype": jnp.float32}
    return {"n_tc": 1, "vmem_limit": 32 * 2**20, "mm_dtype": jnp.float32}


def _row_tile(total, bytes_per_row, *, frac=0.3):
    """Largest multiple-of-8 divisor of `total` whose (double-buffered) row
    working set fits a fraction of the per-chip VMEM budget.

    The forced >=2-step split is only applied on multi-TensorCore parts
    (v7x); on single-TC v5e/v6e the largest divisor wins (fewer grid steps,
    less per-step overhead)."""
    chip = _chip_config()
    budget = int(chip["vmem_limit"] * frac)
    target = max(8, budget // max(2 * int(bytes_per_row), 1))
    cands = [d for d in range(8, total + 1, 8) if total % d == 0 and d <= target]
    if not cands:
        return total          # full block is always a legal BlockSpec
    best = max(cands)
    if chip["n_tc"] > 1 and best == total:
        halves = [d for d in cands if d * 2 <= total]
        if halves:
            best = max(halves)
    return best


def _lane_tile(total, target):
    """Largest multiple-of-128 divisor of `total` that is <= target (falls
    back to the full extent, which is always a legal block)."""
    cands = [d for d in range(128, min(total, target) + 1, 128) if total % d == 0]
    return max(cands) if cands else total


# ---------------------------------------------------------------------------
# Fused square-distance + K-nearest-neighbour selection
# ---------------------------------------------------------------------------
def _select_k(vals, idxs, k):
    """Iterative K-way (min, arg-min) along the last axis.

    `idxs` carries exact integer indices stored in float32 (unique per row),
    so the arg-min is a float cross-lane min; ties pick the smallest index."""
    out_v, out_i = [], []
    for _ in range(k):
        m = jnp.min(vals, axis=-1, keepdims=True)
        am = jnp.min(jnp.where(vals == m, idxs, jnp.float32(3e38)),
                     axis=-1, keepdims=True)
        out_v.append(m)
        out_i.append(am)
        vals = jnp.where(idxs == am, jnp.float32(jnp.inf), vals)
    return jnp.concatenate(out_v, axis=-1), jnp.concatenate(out_i, axis=-1)


def _knn_kernel(q_ref, pt_ref, oidx_ref, vals_sc, idxs_sc, *, k_neighbors):
    """Grid = (B, S tiles, N tiles); N is the reduction axis.

    A running per-row top-K (values + float indices) lives in VMEM scratch and
    is merged with each tile's local top-K; the [S_tile, K] int32 indices are
    written only on the last N tile (the [B,S,N] distances never hit HBM)."""
    n = pl.program_id(2)

    @pl.when(n == 0)
    def _():
        vals_sc[...] = jnp.full(vals_sc.shape, jnp.inf, jnp.float32)
        idxs_sc[...] = jnp.zeros(idxs_sc.shape, jnp.float32)

    q = q_ref[0]                   # (St, 3)  queries
    pt = pt_ref[0]                 # (3, Nt)  points, lane-major
    st, nt = q.shape[0], pt.shape[1]
    # contraction depth is 3 -> VPU broadcast FMAs (no MXU, no cancellation)
    d = jnp.zeros((st, nt), jnp.float32)
    for c in range(3):
        diff = q[:, c:c + 1] - pt[c:c + 1, :]
        d = d + diff * diff
    col = (jax.lax.broadcasted_iota(jnp.int32, (st, nt), 1)
           + n * nt).astype(jnp.float32)

    tv, ti = _select_k(d, col, k_neighbors)                 # tile-local top-K
    mv = jnp.concatenate([vals_sc[...], tv], axis=-1)
    mi = jnp.concatenate([idxs_sc[...], ti], axis=-1)
    nv, ni = _select_k(mv, mi, k_neighbors)                 # merge with running
    vals_sc[...] = nv
    idxs_sc[...] = ni

    @pl.when(n == pl.num_programs(2) - 1)
    def _():
        oidx_ref[0] = ni.astype(jnp.int32)


def knn_indices(new_xyz, xyz, k_neighbors):
    """knn_point(K, xyz, new_xyz): [B,S,3], [B,N,3] -> [B,S,K] int32 indices."""
    B, S, _ = new_xyz.shape
    _, N, _ = xyz.shape
    xyz_t = jnp.transpose(xyz, (0, 2, 1))          # [B, 3, N], points on lanes
    nt = _lane_tile(N, 2048)
    assert nt >= k_neighbors, "N tile must hold at least K candidates"
    st = _row_tile(S, bytes_per_row=nt * 16, frac=0.25)
    chip = _chip_config()
    return pl.pallas_call(
        functools.partial(_knn_kernel, k_neighbors=k_neighbors),
        out_shape=jax.ShapeDtypeStruct((B, S, k_neighbors), jnp.int32),
        grid=(B, S // st, N // nt),
        in_specs=[
            pl.BlockSpec((1, st, 3), lambda b, s, n: (b, s, 0)),
            pl.BlockSpec((1, 3, nt), lambda b, s, n: (b, 0, n)),
        ],
        out_specs=pl.BlockSpec((1, st, k_neighbors), lambda b, s, n: (b, s, 0)),
        scratch_shapes=[pltpu.VMEM((st, k_neighbors), jnp.float32),
                        pltpu.VMEM((st, k_neighbors), jnp.float32)],
        compiler_params=pltpu.CompilerParams(
            dimension_semantics=("parallel", "parallel", "arbitrary"),
            vmem_limit_bytes=chip["vmem_limit"]),
    )(new_xyz, xyz_t)


# ---------------------------------------------------------------------------
# Conv(k=1) + BN + activation kernels
# ---------------------------------------------------------------------------
def _conv_bn_act_kernel(x_ref, w_ref, s_ref, b_ref, o_ref, *, relu, use_mxu,
                        mm_dtype):
    x = x_ref[...]
    w = w_ref[...]
    if use_mxu:
        y = jnp.dot(x.astype(mm_dtype), w.astype(mm_dtype),
                    preferred_element_type=jnp.float32)
    else:
        # tiny contraction (cin=3 embedding): VPU broadcast FMAs instead of a
        # nearly-empty MXU pass.
        y = jnp.zeros((x.shape[0], w.shape[1]), jnp.float32)
        for c in range(w.shape[0]):
            y = y + x[:, c:c + 1] * w[c:c + 1, :]
    y = y * s_ref[...] + b_ref[...]
    if relu:
        y = jnp.maximum(y, 0.0)
    o_ref[...] = y


def conv_bn_act(x, w, scale, shift, *, relu=True):
    """y = act(BN(x @ w)) over rows.  x:[M,Cin], w:[Cin,Cout] -> [M,Cout]."""
    M, cin = x.shape
    cout = w.shape[1]
    chip = _chip_config()
    use_mxu = cin >= 8
    tm = _row_tile(M, bytes_per_row=(cin + 2 * cout) * 4)
    # TODO(synk): pad cout<128 stages to lane-dense 128-wide outputs (and
    # single-buffer grid-invariant weights via pipeline_mode) once validated.
    return pl.pallas_call(
        functools.partial(_conv_bn_act_kernel, relu=relu, use_mxu=use_mxu,
                          mm_dtype=chip["mm_dtype"]),
        out_shape=jax.ShapeDtypeStruct((M, cout), jnp.float32),
        grid=(M // tm,),
        in_specs=[
            pl.BlockSpec((tm, cin), lambda i: (i, 0)),
            pl.BlockSpec((cin, cout), lambda i: (0, 0)),
            pl.BlockSpec((1, cout), lambda i: (0, 0)),
            pl.BlockSpec((1, cout), lambda i: (0, 0)),
        ],
        out_specs=pl.BlockSpec((tm, cout), lambda i: (i, 0)),
        compiler_params=pltpu.CompilerParams(
            dimension_semantics=("parallel",),
            vmem_limit_bytes=chip["vmem_limit"]),
    )(x, w, scale, shift)


def _res_chain(h, blk, n_blocks, mm_dtype):
    """Chain of ConvBNReLURes1D blocks on an f32 row slab held in registers."""
    for i in range(n_blocks):
        w1, s1, b1, w2, s2, b2 = blk[6 * i: 6 * i + 6]
        t = jnp.dot(h.astype(mm_dtype), w1[...].astype(mm_dtype),
                    preferred_element_type=jnp.float32)
        t = jnp.maximum(t * s1[...] + b1[...], 0.0)
        t = jnp.dot(t.astype(mm_dtype), w2[...].astype(mm_dtype),
                    preferred_element_type=jnp.float32)
        t = t * s2[...] + b2[...]
        h = jnp.maximum(t + h, 0.0)
    return h


def _pre_stage_kernel(x_ref, wt_ref, st_ref, bt_ref, *rest, n_blocks, mm_dtype):
    """Fused PreExtraction: transfer conv + res blocks + max over K.

    Grid = (group_tiles, K).  K is the reduction axis; the output block is
    revisited across K and acts as the max accumulator (init at k == 0)."""
    o_ref = rest[-1]
    blk = rest[:-1]
    k = pl.program_id(1)

    x = x_ref[0]                                            # (gt, D)
    h = jnp.dot(x.astype(mm_dtype), wt_ref[...].astype(mm_dtype),
                preferred_element_type=jnp.float32)
    h = jnp.maximum(h * st_ref[...] + bt_ref[...], 0.0)
    h = _res_chain(h, blk, n_blocks, mm_dtype)

    @pl.when(k == 0)
    def _():
        o_ref[...] = h

    @pl.when(k > 0)
    def _():
        o_ref[...] = jnp.maximum(o_ref[...], h)


def pre_extraction(feat_kgd, transfer, blocks):
    """feat_kgd:[K, G, D] grouped features -> pooled [G, Cout]."""
    K, G, D = feat_kgd.shape
    wt, st_, bt = transfer
    cout = wt.shape[1]
    chip = _chip_config()
    hid = max([b["w1"].shape[1] for b in blocks], default=cout)
    gt = _row_tile(G, bytes_per_row=(D + hid + 2 * cout) * 4)

    flat = []
    in_specs = [
        pl.BlockSpec((1, gt, D), lambda g, k: (k, g, 0)),
        pl.BlockSpec((D, cout), lambda g, k: (0, 0)),
        pl.BlockSpec((1, cout), lambda g, k: (0, 0)),
        pl.BlockSpec((1, cout), lambda g, k: (0, 0)),
    ]
    for b in blocks:
        hh = b["w1"].shape[1]
        flat += [b["w1"], b["s1"], b["b1"], b["w2"], b["s2"], b["b2"]]
        in_specs += [
            pl.BlockSpec((cout, hh), lambda g, k: (0, 0)),
            pl.BlockSpec((1, hh), lambda g, k: (0, 0)),
            pl.BlockSpec((1, hh), lambda g, k: (0, 0)),
            pl.BlockSpec((hh, cout), lambda g, k: (0, 0)),
            pl.BlockSpec((1, cout), lambda g, k: (0, 0)),
            pl.BlockSpec((1, cout), lambda g, k: (0, 0)),
        ]

    return pl.pallas_call(
        functools.partial(_pre_stage_kernel, n_blocks=len(blocks),
                          mm_dtype=chip["mm_dtype"]),
        out_shape=jax.ShapeDtypeStruct((G, cout), jnp.float32),
        grid=(G // gt, K),
        in_specs=in_specs,
        out_specs=pl.BlockSpec((gt, cout), lambda g, k: (g, 0)),
        compiler_params=pltpu.CompilerParams(
            dimension_semantics=("parallel", "arbitrary"),
            vmem_limit_bytes=chip["vmem_limit"]),
    )(feat_kgd, wt, st_, bt, *flat)


def _pos_stage_kernel(x_ref, *rest, n_blocks, mm_dtype):
    """Fused PosExtraction: chain of ConvBNReLURes1D blocks, all in VMEM."""
    o_ref = rest[-1]
    blk = rest[:-1]
    o_ref[...] = _res_chain(x_ref[...], blk, n_blocks, mm_dtype)


def pos_extraction(x, blocks):
    if not blocks:
        return x
    M, c = x.shape
    chip = _chip_config()
    hid = max(b["w1"].shape[1] for b in blocks)
    tm = _row_tile(M, bytes_per_row=(3 * c + hid) * 4)
    flat = []
    in_specs = [pl.BlockSpec((tm, c), lambda i: (i, 0))]
    for b in blocks:
        hh = b["w1"].shape[1]
        flat += [b["w1"], b["s1"], b["b1"], b["w2"], b["s2"], b["b2"]]
        in_specs += [
            pl.BlockSpec((c, hh), lambda i: (0, 0)),
            pl.BlockSpec((1, hh), lambda i: (0, 0)),
            pl.BlockSpec((1, hh), lambda i: (0, 0)),
            pl.BlockSpec((hh, c), lambda i: (0, 0)),
            pl.BlockSpec((1, c), lambda i: (0, 0)),
            pl.BlockSpec((1, c), lambda i: (0, 0)),
        ]
    return pl.pallas_call(
        functools.partial(_pos_stage_kernel, n_blocks=len(blocks),
                          mm_dtype=chip["mm_dtype"]),
        out_shape=jax.ShapeDtypeStruct((M, c), jnp.float32),
        grid=(M // tm,),
        in_specs=in_specs,
        out_specs=pl.BlockSpec((tm, c), lambda i: (i, 0)),
        compiler_params=pltpu.CompilerParams(
            dimension_semantics=("parallel",),
            vmem_limit_bytes=chip["vmem_limit"]),
    )(x, *flat)


# ---------------------------------------------------------------------------
# Plain-JAX glue (indexing / sampling / small reductions)
# ---------------------------------------------------------------------------
def index_points(points, idx):
    """points:[B,N,C], idx:[B,...] -> [B,...,C]  (mirrors torch index_points)."""
    B = points.shape[0]
    batch = jnp.arange(B).reshape((B,) + (1,) * (idx.ndim - 1))
    return points[batch, idx]


def furthest_point_sample(xyz, S):
    # TODO(synk): FPS is a sequential, data-dependent argmax chain; kept as a
    # plain-JAX lax.fori_loop (seeded at index 0; torch seeds with randint).
    B, N, _ = xyz.shape

    def body(i, state):
        dist, farthest, idxs = state
        idxs = idxs.at[:, i].set(farthest)
        centroid = jnp.take_along_axis(xyz, farthest[:, None, None], axis=1)
        d = jnp.sum((xyz - centroid) ** 2, axis=-1)
        dist = jnp.minimum(dist, d)
        farthest = jnp.argmax(dist, axis=-1).astype(jnp.int32)
        return dist, farthest, idxs

    dist0 = jnp.full((B, N), 1e10, dtype=jnp.float32)
    far0 = jnp.zeros((B,), dtype=jnp.int32)
    idxs0 = jnp.zeros((B, S), dtype=jnp.int32)
    _, _, idxs = jax.lax.fori_loop(0, S, body, (dist0, far0, idxs0))
    return idxs


# ---------------------------------------------------------------------------
# Parameter construction (deterministic, synthetic)
# ---------------------------------------------------------------------------
def _fold_bn(gamma, beta, mean, var):
    scale = gamma / jnp.sqrt(var + _BN_EPS)
    shift = beta - mean * scale
    return scale.reshape(1, -1), shift.reshape(1, -1)


def make_conv_bn(key, cin, cout):
    w = (jax.random.normal(key, (cin, cout), jnp.float32) / jnp.sqrt(cin)).astype(jnp.float32)
    gamma = jnp.ones((cout,), jnp.float32)
    beta = jnp.zeros((cout,), jnp.float32)
    mean = jnp.zeros((cout,), jnp.float32)
    var = jnp.ones((cout,), jnp.float32)
    s, b = _fold_bn(gamma, beta, mean, var)
    return (w, s, b)


def make_res_block(key, c, res_expansion=1.0):
    h = int(c * res_expansion)
    k1, k2 = jax.random.split(key)
    w1, s1, b1 = make_conv_bn(k1, c, h)
    w2, s2, b2 = make_conv_bn(k2, h, c)
    return dict(w1=w1, s1=s1, b1=b1, w2=w2, s2=s2, b2=b2)


def init_pointmlp(key, in_channels=3, embed_dim=16, res_expansion=1.0,
                  use_xyz=False, dim_expansion=(2, 2), pre_blocks=(1, 1),
                  pos_blocks=(1, 1), k_neighbors=(4, 4), reducers=(2, 2)):
    keys = iter(jax.random.split(key, 128))
    params = {"embedding": make_conv_bn(next(keys), in_channels, embed_dim)}
    stages = []
    last = embed_dim
    for i in range(len(pre_blocks)):
        out_c = last * dim_expansion[i]
        add = 3 if use_xyz else 0
        stage = {
            "k": k_neighbors[i],
            "reduce": reducers[i],
            "use_xyz": use_xyz,
            "alpha": jnp.ones((1, 1, 1, last + add), jnp.float32),
            "beta": jnp.zeros((1, 1, 1, last + add), jnp.float32),
        }
        in_ch = 3 + 2 * last if use_xyz else 2 * last
        stage["transfer"] = make_conv_bn(next(keys), in_ch, out_c)
        stage["pre"] = [make_res_block(next(keys), out_c, res_expansion)
                        for _ in range(pre_blocks[i])]
        stage["pos"] = [make_res_block(next(keys), out_c, res_expansion)
                        for _ in range(pos_blocks[i])]
        stages.append(stage)
        last = out_c
    params["stages"] = stages
    return params


# ---------------------------------------------------------------------------
# Forward pass (PointMLPEncoder.forward_cls_feat, normalize='anchor')
# ---------------------------------------------------------------------------
def pointmlp_forward(params, p):
    """p: [B, N, 3] point positions -> [B, out_channels] global features."""
    B, N, _ = p.shape
    # embedding: x = p.transpose(1,2); ConvBNReLU1D(3 -> embed_dim)
    x = conv_bn_act(p.reshape(B * N, -1), *params["embedding"]).reshape(B, N, -1)
    xyz = p

    for st in params["stages"]:
        _, Nc, C = x.shape
        S = Nc // st["reduce"]
        K = st["k"]

        # --- LocalGrouper ---
        fps_idx = furthest_point_sample(xyz, S)               # [B, S]
        new_xyz = index_points(xyz, fps_idx)                  # [B, S, 3]
        new_points = index_points(x, fps_idx)                 # [B, S, C]
        knn_idx = knn_indices(new_xyz, xyz, K)                # fused Pallas KNN
        grouped_xyz = index_points(xyz, knn_idx)              # [B, S, K, 3]
        grouped_points = index_points(x, knn_idx)             # [B, S, K, C]
        if st["use_xyz"]:
            grouped_points = jnp.concatenate([grouped_points, grouped_xyz], axis=-1)
        # normalize == 'anchor'
        # TODO(synk): fuse this gather + anchor-normalize + per-batch std into
        # pre_extraction (scalar-prefetched knn_idx + manual DMA gather) so
        # new_feat [B,S,K,2C] never round-trips through HBM.
        anchor = (jnp.concatenate([new_points, new_xyz], axis=-1)
                  if st["use_xyz"] else new_points)
        mean = anchor[:, :, None, :]
        diff = grouped_points - mean
        std = jnp.std(diff.reshape(B, -1), axis=-1, ddof=1)[:, None, None, None]
        gp = st["alpha"] * (diff / (std + 1e-5)) + st["beta"]
        new_feat = jnp.concatenate(
            [gp, jnp.broadcast_to(new_points[:, :, None, :],
                                  (B, S, K, new_points.shape[-1]))], axis=-1)

        # --- PreExtraction (fused: transfer + res blocks + max over K) ---
        D = new_feat.shape[-1]
        feat_kgd = jnp.moveaxis(new_feat, 2, 0).reshape(K, B * S, D)
        xr = pre_extraction(feat_kgd, st["transfer"], st["pre"])   # [B*S, Cout]

        # --- PosExtraction (fused chain of res blocks) ---
        xr = pos_extraction(xr, st["pos"])

        cout = xr.shape[-1]
        x = xr.reshape(B, S, cout)
        xyz = new_xyz

    # final adaptive_max_pool1d over points
    return x.max(axis=1)                                      # [B, out_channels]


if __name__ == "__main__":
    key = jax.random.PRNGKey(0)
    k_pts, k_par = jax.random.split(key)
    B, N = 2, 32
    p = jax.random.normal(k_pts, (B, N, 3), jnp.float32)
    params = init_pointmlp(
        k_par, in_channels=3, embed_dim=16, res_expansion=1.0, use_xyz=False,
        dim_expansion=(2, 2), pre_blocks=(1, 1), pos_blocks=(1, 1),
        k_neighbors=(4, 4), reducers=(2, 2))
    out = jax.block_until_ready(pointmlp_forward(params, p))
    assert out.shape == (B, 64), out.shape
    print("KERNEL_OK")
</pallas_src>

<mosaic_0001>
module attributes {stable_mosaic.version = 11 : i64} {
  func.func @_conv_bn_act_kernel(%arg0: i32, %arg1: memref<64x3xf32, #tpu.memory_space<vmem>>, %arg2: memref<3x16xf32, #tpu.memory_space<vmem>>, %arg3: memref<1x16xf32, #tpu.memory_space<vmem>>, %arg4: memref<1x16xf32, #tpu.memory_space<vmem>>, %arg5: memref<64x16xf32, #tpu.memory_space<vmem>>) attributes {dimension_semantics = [#tpu.dimension_semantics<parallel>], iteration_bounds = array<i64: 1>, scalar_prefetch = 0 : i64, scratch_operands = 0 : i64, tpu.core_type = #tpu.core_type<tc>, window_params = [{transform_indices = @transform_0, window_bounds = array<i64: 64, 3>}, {pipeline_mode = #tpu.pipeline_mode<synchronous>, transform_indices = @transform_1, window_bounds = array<i64: 3, 16>}, {pipeline_mode = #tpu.pipeline_mode<synchronous>, transform_indices = @transform_2, window_bounds = array<i64: 1, 16>}, {pipeline_mode = #tpu.pipeline_mode<synchronous>, transform_indices = @transform_3, window_bounds = array<i64: 1, 16>}, {transform_indices = @transform_4, window_bounds = array<i64: 64, 16>}]} {
    %c0 = arith.constant 0 : index
    %c0_0 = arith.constant 0 : index
    %0 = vector.load %arg1[%c0, %c0_0] : memref<64x3xf32, #tpu.memory_space<vmem>>, vector<64x3xf32>
    %c0_1 = arith.constant 0 : index
    %c0_2 = arith.constant 0 : index
    %1 = vector.load %arg2[%c0_1, %c0_2] : memref<3x16xf32, #tpu.memory_space<vmem>>, vector<3x16xf32>
    %cst = arith.constant 0.000000e+00 : f32
    %2 = vector.broadcast %cst : f32 to vector<64x16xf32>
    %3 = vector.extract_strided_slice %0 {offsets = [0, 0], sizes = [64, 1], strides = [1, 1]} : vector<64x3xf32> to vector<64x1xf32>
    %4 = vector.extract_strided_slice %1 {offsets = [0, 0], sizes = [1, 16], strides = [1, 1]} : vector<3x16xf32> to vector<1x16xf32>
    %5 = vector.broadcast %3 : vector<64x1xf32> to vector<64x16xf32>
    %6 = vector.broadcast %4 : vector<1x16xf32> to vector<64x16xf32>
    %7 = arith.mulf %5, %6 : vector<64x16xf32>
    %8 = arith.addf %2, %7 : vector<64x16xf32>
    %9 = vector.extract_strided_slice %0 {offsets = [0, 1], sizes = [64, 1], strides = [1, 1]} : vector<64x3xf32> to vector<64x1xf32>
    %10 = vector.extract_strided_slice %1 {offsets = [1, 0], sizes = [1, 16], strides = [1, 1]} : vector<3x16xf32> to vector<1x16xf32>
    %11 = vector.broadcast %9 : vector<64x1xf32> to vector<64x16xf32>
    %12 = vector.broadcast %10 : vector<1x16xf32> to vector<64x16xf32>
    %13 = arith.mulf %11, %12 : vector<64x16xf32>
    %14 = arith.addf %8, %13 : vector<64x16xf32>
    %15 = vector.extract_strided_slice %0 {offsets = [0, 2], sizes = [64, 1], strides = [1, 1]} : vector<64x3xf32> to vector<64x1xf32>
    %16 = vector.extract_strided_slice %1 {offsets = [2, 0], sizes = [1, 16], strides = [1, 1]} : vector<3x16xf32> to vector<1x16xf32>
    %17 = vector.broadcast %15 : vector<64x1xf32> to vector<64x16xf32>
    %18 = vector.broadcast %16 : vector<1x16xf32> to vector<64x16xf32>
    %19 = arith.mulf %17, %18 : vector<64x16xf32>
    %20 = arith.addf %14, %19 : vector<64x16xf32>
    %c0_3 = arith.constant 0 : index
    %c0_4 = arith.constant 0 : index
    %21 = vector.load %arg3[%c0_3, %c0_4] : memref<1x16xf32, #tpu.memory_space<vmem>>, vector<1x16xf32>
    %22 = vector.broadcast %21 : vector<1x16xf32> to vector<64x16xf32>
    %23 = arith.mulf %20, %22 : vector<64x16xf32>
    %c0_5 = arith.constant 0 : index
    %c0_6 = arith.constant 0 : index
    %24 = vector.load %arg4[%c0_5, %c0_6] : memref<1x16xf32, #tpu.memory_space<vmem>>, vector<1x16xf32>
    %25 = vector.broadcast %24 : vector<1x16xf32> to vector<64x16xf32>
    %26 = arith.addf %23, %25 : vector<64x16xf32>
    %cst_7 = arith.constant 0.000000e+00 : f32
    %27 = vector.broadcast %cst_7 : f32 to vector<64x16xf32>
    %28 = arith.maximumf %26, %27 : vector<64x16xf32>
    %c0_8 = arith.constant 0 : index
    %c0_9 = arith.constant 0 : index
    %29 = vector.load %arg5[%c0_8, %c0_9] : memref<64x16xf32, #tpu.memory_space<vmem>>, vector<64x16xf32>
    tpu.vector_store %arg5[%c0_8, %c0_9], %28 {strides = array<i32>} : memref<64x16xf32, #tpu.memory_space<vmem>>, vector<64x16xf32>,
    return
  }
  func.func @transform_0(%arg0: i32) -> (i32, i32) {
    %c0_i32 = arith.constant 0 : i32
    %c0_i32_0 = arith.constant 0 : i32
    return %arg0, %c0_i32 : i32, i32
  }
  func.func @transform_1(%arg0: i32) -> (i32, i32) {
    %c0_i32 = arith.constant 0 : i32
    %c0_i32_0 = arith.constant 0 : i32
    %c0_i32_1 = arith.constant 0 : i32
    return %c0_i32, %c0_i32_0 : i32, i32
  }
  func.func @transform_2(%arg0: i32) -> (i32, i32) {
    %c0_i32 = arith.constant 0 : i32
    %c0_i32_0 = arith.constant 0 : i32
    %c0_i32_1 = arith.constant 0 : i32
    return %c0_i32, %c0_i32_0 : i32, i32
  }
  func.func @transform_3(%arg0: i32) -> (i32, i32) {
    %c0_i32 = arith.constant 0 : i32
    %c0_i32_0 = arith.constant 0 : i32
    %c0_i32_1 = arith.constant 0 : i32
    return %c0_i32, %c0_i32_0 : i32, i32
  }
  func.func @transform_4(%arg0: i32) -> (i32, i32) {
    %c0_i32 = arith.constant 0 : i32
    %c0_i32_0 = arith.constant 0 : i32
    return %arg0, %c0_i32 : i32, i32
  }
}

</mosaic_0001>

<llo_original>
// kernel: tpu_custom_call.1
$region0: #{tpu_custom_call.1}
  #allocation0 [shape = 'u32[]', space=smem, size = 0x4, offset = 0x4, fixed_abs, tag = 'smem constant byte address 0x4 - core index']
  #allocation1 [shape = 'u32[72,128]{1,0:T(1,128)}', space=vmem, size = 0x9000, scoped, tag = 'internal scratch']
  %s0 = inlined_call_operand.vmem [shape: f32[64,3], index: 0, kind: input, shape index: {}]
  %s1 = inlined_call_operand.vmem [shape: f32[3,16], index: 1, kind: input, shape index: {}]
  %s2 = inlined_call_operand.vmem [shape: f32[1,16], index: 2, kind: input, shape index: {}]
  %s3 = inlined_call_operand.vmem [shape: f32[1,16], index: 3, kind: input, shape index: {}]
  %s4 = inlined_call_operand.vmem [shape: f32[64,16], index: 4, kind: output, shape index: {}]
  %s5 = sld [smem:[#allocation0]]
  $region26: #{tpu_custom_call.1} parent=0
    _
  %s7 = ssub.s32 1, %s5
  %s8 = scalar_select 0, %s7, %s5
  // Predicated region
  $region2: #{tpu_custom_call.1} parent=0 // pred_check
    _
  $region3: #{tpu_custom_call.1} parent=0 // pred_check_branch
    %10 = sbr.rel (0) target = $region5
  $region4: #{tpu_custom_call.1} parent=0 // pred_region
    _
  $region5: #{tpu_custom_call.1} parent=0 // pred_fallthru
    _
  // Predicated region
  $region6: #{tpu_custom_call.1} parent=0 // pred_check
    _
  $region7: #{tpu_custom_call.1} parent=0 // pred_check_branch
    %12 = sbr.rel (0) target = $region9
  $region8: #{tpu_custom_call.1} parent=0 // pred_region
    _
  $region9: #{tpu_custom_call.1} parent=0 // pred_fallthru
    _
  // Predicated region
  $region10: #{tpu_custom_call.1} parent=0 // pred_check
    _
  $region11: #{tpu_custom_call.1} parent=0 // pred_check_branch
    %14 = sbr.rel (0) target = $region13
  $region12: #{tpu_custom_call.1} parent=0 // pred_region
    _
  $region13: #{tpu_custom_call.1} parent=0 // pred_fallthru
    _
  // Predicated region
  $region14: #{tpu_custom_call.1} parent=0 // pred_check
    _
  $region15: #{tpu_custom_call.1} parent=0 // pred_check_branch
    %16 = sbr.rel (0) target = $region17
  $region16: #{tpu_custom_call.1} parent=0 // pred_region
    _
  $region17: #{tpu_custom_call.1} parent=0 // pred_fallthru
    _
  %v17 = vld [vmem:[%s0] sm:$0xff]
  %v18 = vld [vmem:[%s0 + $0x8] sm:$0xff]
  %v19 = vld [vmem:[%s0 + $0x10] sm:$0xff]
  %v20 = vld [vmem:[%s0 + $0x18] sm:$0xff]
  %v21 = vld [vmem:[%s0 + $0x20] sm:$0xff]
  %v22 = vld [vmem:[%s0 + $0x28] sm:$0xff]
  %v23 = vld [vmem:[%s0 + $0x30] sm:$0xff]
  %v24 = vld [vmem:[%s0 + $0x38] sm:$0xff]
  %v25 = vld [vmem:[%s1] sm:$0x7]
  %27 = vset.pattern.permute.xlu0 0
  %28 = vperm.xlu0 %27, %v17
  %v29 = vpop.permute.xlu0 %28
  %32 = vset.pattern.permute.xlu0 0
  %33 = vperm.xlu0 %32, %v18
  %v34 = vpop.permute.xlu0 %33
  %37 = vset.pattern.permute.xlu0 0
  %38 = vperm.xlu0 %37, %v19
  %v39 = vpop.permute.xlu0 %38
  %42 = vset.pattern.permute.xlu0 0
  %43 = vperm.xlu0 %42, %v20
  %v44 = vpop.permute.xlu0 %43
  %47 = vset.pattern.permute.xlu0 0
  %48 = vperm.xlu0 %47, %v21
  %v49 = vpop.permute.xlu0 %48
  %52 = vset.pattern.permute.xlu0 0
  %53 = vperm.xlu0 %52, %v22
  %v54 = vpop.permute.xlu0 %53
  %57 = vset.pattern.permute.xlu0 0
  %58 = vperm.xlu0 %57, %v23
  %v59 = vpop.permute.xlu0 %58
  %62 = vset.pattern.permute.xlu0 0
  %63 = vperm.xlu0 %62, %v24
  %v64 = vpop.permute.xlu0 %63
  %v66 = vperm.slane %v25, 0
  %v67 = vmul.f32 %v29, %v66
  %v68 = vmul.f32 %v34, %v66
  %v69 = vmul.f32 %v39, %v66
  %v70 = vmul.f32 %v44, %v66
  %v71 = vmul.f32 %v49, %v66
  %v72 = vmul.f32 %v54, %v66
  %v73 = vmul.f32 %v59, %v66
  %v74 = vmul.f32 %v64, %v66
  %v75 = vadd.f32 %v67, 0.0
  %v76 = vadd.f32 %v68, 0.0
  %v77 = vadd.f32 %v69, 0.0
  %v78 = vadd.f32 %v70, 0.0
  %v79 = vadd.f32 %v71, 0.0
  %v80 = vadd.f32 %v72, 0.0
  %v81 = vadd.f32 %v73, 0.0
  %v82 = vadd.f32 %v74, 0.0
  %83 = vset.pattern.permute.xlu0 1
  %84 = vperm.xlu0 %83, %v17
  %v85 = vpop.permute.xlu0 %84
  %87 = vset.pattern.permute.xlu0 1
  %88 = vperm.xlu0 %87, %v18
  %v89 = vpop.permute.xlu0 %88
  %91 = vset.pattern.permute.xlu0 1
  %92 = vperm.xlu0 %91, %v19
  %v93 = vpop.permute.xlu0 %92
  %95 = vset.pattern.permute.xlu0 1
  %96 = vperm.xlu0 %95, %v20
  %v97 = vpop.permute.xlu0 %96
  %99 = vset.pattern.permute.xlu0 1
  %100 = vperm.xlu0 %99, %v21
  %v101 = vpop.permute.xlu0 %100
  %103 = vset.pattern.permute.xlu0 1
  %104 = vperm.xlu0 %103, %v22
  %v105 = vpop.permute.xlu0 %104
  %107 = vset.pattern.permute.xlu0 1
  %108 = vperm.xlu0 %107, %v23
  %v109 = vpop.permute.xlu0 %108
  %111 = vset.pattern.permute.xlu0 1
  %112 = vperm.xlu0 %111, %v24
  %v113 = vpop.permute.xlu0 %112
  %v115 = vperm.slane %v25, 1
  %v116 = vmul.f32 %v85, %v115
  %v117 = vmul.f32 %v89, %v115
  %v118 = vmul.f32 %v93, %v115
  %v119 = vmul.f32 %v97, %v115
  %v120 = vmul.f32 %v101, %v115
  %v121 = vmul.f32 %v105, %v115
  %v122 = vmul.f32 %v109, %v115
  %v123 = vmul.f32 %v113, %v115
  %v124 = vadd.f32 %v75, %v116
  %v125 = vadd.f32 %v76, %v117
  %v126 = vadd.f32 %v77, %v118
  %v127 = vadd.f32 %v78, %v119
  %v128 = vadd.f32 %v79, %v120
  %v129 = vadd.f32 %v80, %v121
  %v130 = vadd.f32 %v81, %v122
  %v131 = vadd.f32 %v82, %v123
  %132 = vset.pattern.permute.xlu0 2
  %133 = vperm.xlu0 %132, %v17
  %v134 = vpop.permute.xlu0 %133
  %136 = vset.pattern.permute.xlu0 2
  %137 = vperm.xlu0 %136, %v18
  %v138 = vpop.permute.xlu0 %137
  %140 = vset.pattern.permute.xlu0 2
  %141 = vperm.xlu0 %140, %v19
  %v142 = vpop.permute.xlu0 %141
  %144 = vset.pattern.permute.xlu0 2
  %145 = vperm.xlu0 %144, %v20
  %v146 = vpop.permute.xlu0 %145
  %148 = vset.pattern.permute.xlu0 2
  %149 = vperm.xlu0 %148, %v21
  %v150 = vpop.permute.xlu0 %149
  %152 = vset.pattern.permute.xlu0 2
  %153 = vperm.xlu0 %152, %v22
  %v154 = vpop.permute.xlu0 %153
  %156 = vset.pattern.permute.xlu0 2
  %157 = vperm.xlu0 %156, %v23
  %v158 = vpop.permute.xlu0 %157
  %160 = vset.pattern.permute.xlu0 2
  %161 = vperm.xlu0 %160, %v24
  %v162 = vpop.permute.xlu0 %161
  %v164 = vperm.slane %v25, 2
  %v165 = vmul.f32 %v134, %v164
  %v166 = vmul.f32 %v138, %v164
  %v167 = vmul.f32 %v142, %v164
  %v168 = vmul.f32 %v146, %v164
  %v169 = vmul.f32 %v150, %v164
  %v170 = vmul.f32 %v154, %v164
  %v171 = vmul.f32 %v158, %v164
  %v172 = vmul.f32 %v162, %v164
  %v173 = vadd.f32 %v124, %v165
  %v174 = vadd.f32 %v125, %v166
  %v175 = vadd.f32 %v126, %v167
  %v176 = vadd.f32 %v127, %v168
  %v177 = vadd.f32 %v128, %v169
  %v178 = vadd.f32 %v129, %v170
  %v179 = vadd.f32 %v130, %v171
  %v180 = vadd.f32 %v131, %v172
  %v181 = vld [vmem:[%s2] sm:$0x1]
  %v183 = vperm.slane %v181, 0
  %v185 = vmul.f32 %v173, %v183
  %v186 = vmul.f32 %v174, %v183
  %v187 = vmul.f32 %v175, %v183
  %v188 = vmul.f32 %v176, %v183
  %v189 = vmul.f32 %v177, %v183
  %v190 = vmul.f32 %v178, %v183
  %v191 = vmul.f32 %v179, %v183
  %v192 = vmul.f32 %v180, %v183
  %v193 = vld [vmem:[%s3] sm:$0x1]
  %v195 = vperm.slane %v193, 0
  %v197 = vadd.f32 %v185, %v195
  %v198 = vadd.f32 %v186, %v195
  %v199 = vadd.f32 %v187, %v195
  %v200 = vadd.f32 %v188, %v195
  %v201 = vadd.f32 %v189, %v195
  %v202 = vadd.f32 %v190, %v195
  %v203 = vadd.f32 %v191, %v195
  %v204 = vadd.f32 %v192, %v195
  %v205 = vmax.f32 %v197, 0.0
  %v206 = vmax.f32 %v198, 0.0
  %v207 = vmax.f32 %v199, 0.0
  %v208 = vmax.f32 %v200, 0.0
  %v209 = vmax.f32 %v201, 0.0
  %v210 = vmax.f32 %v202, 0.0
  %v211 = vmax.f32 %v203, 0.0
  %v212 = vmax.f32 %v204, 0.0
  %vm213 = vcmask 130048
  %214 = vst.msk [vmem:[%s4] sm:$0xff] %vm213, %v205
  %215 = vst.msk [vmem:[%s4 + $0x8] sm:$0xff] %vm213, %v206
  %216 = vst.msk [vmem:[%s4 + $0x10] sm:$0xff] %vm213, %v207
  %217 = vst.msk [vmem:[%s4 + $0x18] sm:$0xff] %vm213, %v208
  %218 = vst.msk [vmem:[%s4 + $0x20] sm:$0xff] %vm213, %v209
  %219 = vst.msk [vmem:[%s4 + $0x28] sm:$0xff] %vm213, %v210
  %220 = vst.msk [vmem:[%s4 + $0x30] sm:$0xff] %vm213, %v211
  %221 = vst.msk [vmem:[%s4 + $0x38] sm:$0xff] %vm213, %v212
  // Predicated region
  $region18: #{tpu_custom_call.1} parent=0 // pred_check
    _
  $region19: #{tpu_custom_call.1} parent=0 // pred_check_branch
    %223 = sbr.rel (0) target = $region21
  $region20: #{tpu_custom_call.1} parent=0 // pred_region
    _
  $region21: #{tpu_custom_call.1} parent=0 // pred_fallthru
    _
  // Predicated region
  $region22: #{tpu_custom_call.1} parent=0 // pred_check
    _
  $region23: #{tpu_custom_call.1} parent=0 // pred_check_branch
    %225 = sbr.rel (0) target = $region25
  $region24: #{tpu_custom_call.1} parent=0 // pred_region
    _
  $region25: #{tpu_custom_call.1} parent=0 // pred_fallthru
    _

</llo_original>
